<compile_context>
chip_gen: v7x
topology: tpu7x:2x2x1
jax: 0.10.0
libtpu: 0.0.40
codegen_flags: <defaults>
</compile_context>

<pallas_src>
import jax
import jax.numpy as jnp
import numpy as np
from jax import lax
from jax.experimental import pallas as pl
from jax.experimental.pallas import tpu as pltpu


_LANE = 128


def _round_up(x, m):
    return ((x + m - 1) // m) * m


def _tpu_tile_config():
    """Generation-aware (tile_target, vmem_limit_bytes).

    v5e/v6e: 128 MiB physical VMEM -> big tiles, higher scoped limit.
    v7x:      64 MiB per TensorCore -> cap tile at 2048 and limit at 48 MiB.
    Falls back to the conservative (v7x-safe) config if the query fails.
    """
    vmem_bytes = 64 * 1024 * 1024
    try:
        vmem_bytes = int(pltpu.get_tpu_info().vmem_capacity_bytes)
    except Exception:
        pass
    if vmem_bytes > 96 * 1024 * 1024:           # v5e / v6e class
        return 4096, 64 * 1024 * 1024
    return 2048, 48 * 1024 * 1024               # v7x class


def _choose_tile(p, n, tile_target):
    """Pick (tile_p, p_pad): lane-dense tiles, minimal padding, >=2 grid steps."""
    p_pad = _round_up(p, _LANE)
    if p_pad <= tile_target:
        # Small-P: keep stores lane-dense; if N==1, split into two tiles so
        # both v7x TensorCores get a grid step.
        if n < 2 and p_pad >= 2 * _LANE:
            tile_p = _round_up(p_pad // 2, _LANE)
            return tile_p, 2 * tile_p
        return p_pad, p_pad
    n_tiles = -(-p_pad // tile_target)                       # ceil
    tile_p = _round_up(-(-p_pad // n_tiles), _LANE)          # <= tile_target
    return tile_p, n_tiles * tile_p


# ----------------------------- Pallas kernel -----------------------------
def _patch_embed_kernel(a_ref, w_ref, shift_ref, o_ref):
    # a_ref:     (1, K, TILE_P)  im2col patch columns for one image tile (bf16/f32)
    # w_ref:     (E, K)          conv weight with BN scale pre-folded (bf16/f32)
    # shift_ref: (E, 1)          folded conv-bias + BN shift (f32)
    # o_ref:     (1, E, TILE_P)  lane-dense output tile
    acc = jnp.dot(w_ref[...], a_ref[0], preferred_element_type=jnp.float32)
    o_ref[0] = (acc + shift_ref[...]).astype(o_ref.dtype)


def _pallas_conv_bn(a, w_ek, shift, tile_p, vmem_limit, out_dtype):
    """a: (N, K, Pp)  w_ek: (E, K)  shift: (E, 1)  -> (N, E, Pp)."""
    n, k, p_pad = a.shape
    e = w_ek.shape[0]
    grid = (n, p_pad // tile_p)

    flops = 2 * n * p_pad * k * e
    bytes_accessed = (a.size * a.dtype.itemsize
                      + w_ek.size * w_ek.dtype.itemsize
                      + shift.size * shift.dtype.itemsize
                      + n * e * p_pad * jnp.dtype(out_dtype).itemsize)

    return pl.pallas_call(
        _patch_embed_kernel,
        out_shape=jax.ShapeDtypeStruct((n, e, p_pad), out_dtype),
        grid=grid,
        in_specs=[
            pl.BlockSpec((1, k, tile_p), lambda ni, pi: (ni, 0, pi)),
            pl.BlockSpec((e, k), lambda ni, pi: (0, 0)),
            pl.BlockSpec((e, 1), lambda ni, pi: (0, 0)),
        ],
        out_specs=pl.BlockSpec((1, e, tile_p), lambda ni, pi: (ni, 0, pi)),
        compiler_params=pltpu.CompilerParams(
            dimension_semantics=("parallel", "parallel"),
            vmem_limit_bytes=int(vmem_limit),
            # Let XLA fuse the patch-operand producer chain (cast/reshape/pad)
            # into the kernel's input DMA instead of an extra HBM round-trip.
            allow_input_fusion=[True, False, False],
        ),
        cost_estimate=pl.CostEstimate(
            flops=int(flops), transcendentals=0,
            bytes_accessed=int(bytes_accessed)),
    )(a, w_ek, shift)


# ----------------------------- glue / wrapper -----------------------------
def _extract_patches(x, kh, kw, stride, pad):
    """x: (N, C, H, W) -> (N, C*KH*KW, OH*OW) in a single fused XLA pass.

    conv_general_dilated_patches orders the feature dim as
    "c" + spatial(rhs_spec) = (C, KH, KW), which matches the PyTorch OIHW
    weight reshape w.reshape(E, C*KH*KW).
    """
    n, c, h, w = x.shape
    patches = lax.conv_general_dilated_patches(
        x, (kh, kw), (stride, stride),
        padding=((pad, pad), (pad, pad)),
        dimension_numbers=("NCHW", "OIHW", "NCHW"))
    oh = (h + 2 * pad - kh) // stride + 1
    ow = (w + 2 * pad - kw) // stride + 1
    return patches.reshape(n, c * kh * kw, oh * ow), oh, ow


def patch_embed_forward(x, params, *, patch_size=7, stride=4,
                        compute_dtype=jnp.bfloat16, out_dtype=jnp.float32):
    """x: (N, C, H, W) float32 -> (N, E, OH, OW) out_dtype."""
    w = params["conv_w"]            # (E, C, KH, KW)
    b = params["conv_b"]            # (E,)
    gamma = params["bn_gamma"]      # (E,)
    beta = params["bn_beta"]        # (E,)
    mean = params["bn_mean"]        # (E,)
    var = params["bn_var"]          # (E,)
    eps = params["bn_eps"]

    e, c, kh, kw = w.shape
    pad = patch_size // 2
    n = x.shape[0]

    # Fold BN (inference, running stats) + conv bias; pre-scale the weight so
    # the kernel epilogue is a single add + cast.
    inv_std = 1.0 / jnp.sqrt(var + eps)
    scale = gamma * inv_std                                           # (E,)
    w_ek = (w.reshape(e, c * kh * kw) * scale[:, None]).astype(compute_dtype)
    shift = ((b - mean) * scale + beta).reshape(e, 1).astype(jnp.float32)

    # Patch extraction in the compute dtype: the KHxKW-expanded im2col stream
    # is the dominant HBM traffic, so move it as bf16 before the kernel reads.
    a, oh, ow = _extract_patches(x.astype(compute_dtype), kh, kw, stride, pad)
    p = oh * ow

    tile_target, vmem_limit = _tpu_tile_config()
    tile_p, p_pad = _choose_tile(p, n, tile_target)
    if p_pad != p:
        # Only P is padded (cheap, lane-dense); never pad K.
        a = jnp.pad(a, ((0, 0), (0, 0), (0, p_pad - p)))

    out = _pallas_conv_bn(a, w_ek, shift, tile_p, vmem_limit, out_dtype)
    out = out[:, :, :p]              # drop padded columns (keep this slice!)
    return out.reshape(n, e, oh, ow)  # already NCHW, no transpose pass


def make_params(key, in_chans, embed_dim, patch_size):
    # Conv2d init per PatchEmbed.initialize_layer: weight ~ N(0, 0.001), bias = 0
    w = 0.001 * jax.random.normal(
        key, (embed_dim, in_chans, patch_size, patch_size), dtype=jnp.float32)
    return {
        "conv_w": w,
        "conv_b": jnp.zeros((embed_dim,), jnp.float32),
        # BatchNorm2d default init (running stats -> inference semantics)
        "bn_gamma": jnp.ones((embed_dim,), jnp.float32),
        "bn_beta": jnp.zeros((embed_dim,), jnp.float32),
        "bn_mean": jnp.zeros((embed_dim,), jnp.float32),
        "bn_var": jnp.ones((embed_dim,), jnp.float32),
        "bn_eps": 1e-5,
    }


def _reference_forward(x, params, *, patch_size=7, stride=4):
    """Pure-JAX reference (lax.conv + BN) for correctness check."""
    pad = patch_size // 2
    y = lax.conv_general_dilated(
        x, params["conv_w"], window_strides=(stride, stride),
        padding=((pad, pad), (pad, pad)),
        dimension_numbers=("NCHW", "OIHW", "NCHW"))
    y = y + params["conv_b"][None, :, None, None]
    inv = 1.0 / jnp.sqrt(params["bn_var"] + params["bn_eps"])
    y = (y - params["bn_mean"][None, :, None, None]) * \
        (params["bn_gamma"] * inv)[None, :, None, None] + \
        params["bn_beta"][None, :, None, None]
    return y


if __name__ == "__main__":
    key = jax.random.PRNGKey(0)
    kx, kw_key = jax.random.split(key)

    # small shapes consistent with the module (in_chans=3 default)
    N, C, H, W = 2, 3, 16, 16
    EMBED_DIM, PATCH, STRIDE = 32, 7, 4

    x = jax.random.normal(kx, (N, C, H, W), dtype=jnp.float32)
    params = make_params(kw_key, C, EMBED_DIM, PATCH)

    y_ref = jax.block_until_ready(
        _reference_forward(x, params, patch_size=PATCH, stride=STRIDE))

    # Strict-precision path (f32 end to end).
    y_f32 = jax.block_until_ready(
        patch_embed_forward(x, params, patch_size=PATCH, stride=STRIDE,
                            compute_dtype=jnp.float32))
    # Default performance path (bf16 patch/weight traffic, f32 accumulate).
    y_bf16 = jax.block_until_ready(
        patch_embed_forward(x, params, patch_size=PATCH, stride=STRIDE))

    OH = (H + 2 * (PATCH // 2) - PATCH) // STRIDE + 1
    OW = (W + 2 * (PATCH // 2) - PATCH) // STRIDE + 1
    assert y_f32.shape == (N, EMBED_DIM, OH, OW)
    assert y_bf16.shape == (N, EMBED_DIM, OH, OW)

    np.testing.assert_allclose(np.asarray(y_f32), np.asarray(y_ref),
                               rtol=1e-4, atol=1e-5)
    np.testing.assert_allclose(np.asarray(y_bf16), np.asarray(y_ref),
                               rtol=2e-2, atol=2e-3)
    print("KERNEL_OK")
</pallas_src>

<mosaic_0001>
module attributes {stable_mosaic.version = 11 : i64} {
  func.func @_patch_embed_kernel(%arg0: i32, %arg1: i32, %arg2: memref<1x147x128xf32, #tpu.memory_space<vmem>>, %arg3: memref<32x147xf32, #tpu.memory_space<vmem>>, %arg4: memref<32x1xf32, #tpu.memory_space<vmem>>, %arg5: memref<1x32x128xf32, #tpu.memory_space<vmem>>) attributes {dimension_semantics = [#tpu.dimension_semantics<parallel>, #tpu.dimension_semantics<parallel>], iteration_bounds = array<i64: 2, 1>, scalar_prefetch = 0 : i64, scratch_operands = 0 : i64, tpu.core_type = #tpu.core_type<tc>, window_params = [{transform_indices = @transform_0, window_bounds = array<i64: 1, 147, 128>}, {pipeline_mode = #tpu.pipeline_mode<synchronous>, transform_indices = @transform_1, window_bounds = array<i64: 32, 147>}, {pipeline_mode = #tpu.pipeline_mode<synchronous>, transform_indices = @transform_2, window_bounds = array<i64: 32, 1>}, {transform_indices = @transform_3, window_bounds = array<i64: 1, 32, 128>}]} {
    %c0 = arith.constant 0 : index
    %c0_0 = arith.constant 0 : index
    %0 = vector.load %arg3[%c0, %c0_0] : memref<32x147xf32, #tpu.memory_space<vmem>>, vector<32x147xf32>
    %c0_1 = arith.constant 0 : index
    %c0_2 = arith.constant 0 : index
    %c0_3 = arith.constant 0 : index
    %1 = vector.load %arg2[%c0_1, %c0_2, %c0_3] : memref<1x147x128xf32, #tpu.memory_space<vmem>>, vector<1x147x128xf32>
    %2 = vector.shape_cast %1 : vector<1x147x128xf32> to vector<147x128xf32>
    %cst = arith.constant dense<0.000000e+00> : vector<32x128xf32>
    %3 = tpu.matmul %0, %2, %cst {dimension_numbers = #tpu.dot_dimension_numbers<[1], [0], [0], [1], [0, 0, 1, 1], [], []>} : vector<32x147xf32>, vector<147x128xf32>, vector<32x128xf32> -> vector<32x128xf32>
    %c0_4 = arith.constant 0 : index
    %c0_5 = arith.constant 0 : index
    %4 = vector.load %arg4[%c0_4, %c0_5] : memref<32x1xf32, #tpu.memory_space<vmem>>, vector<32x1xf32>
    %5 = vector.broadcast %4 : vector<32x1xf32> to vector<32x128xf32>
    %6 = arith.addf %3, %5 : vector<32x128xf32>
    %c0_6 = arith.constant 0 : index
    %c0_7 = arith.constant 0 : index
    %c0_8 = arith.constant 0 : index
    %7 = vector.load %arg5[%c0_6, %c0_7, %c0_8] : memref<1x32x128xf32, #tpu.memory_space<vmem>>, vector<1x32x128xf32>
    %8 = vector.shape_cast %7 : vector<1x32x128xf32> to vector<32x128xf32>
    %9 = vector.shape_cast %6 : vector<32x128xf32> to vector<1x32x128xf32>
    tpu.vector_store %arg5[%c0_6, %c0_7, %c0_8], %9 {strides = array<i32>} : memref<1x32x128xf32, #tpu.memory_space<vmem>>, vector<1x32x128xf32>,
    return
  }
  func.func @transform_0(%arg0: i32, %arg1: i32) -> (i32, i32, i32) {
    %c0_i32 = arith.constant 0 : i32
    %c0_i32_0 = arith.constant 0 : i32
    return %arg0, %c0_i32, %arg1 : i32, i32, i32
  }
  func.func @transform_1(%arg0: i32, %arg1: i32) -> (i32, i32) {
    %c0_i32 = arith.constant 0 : i32
    %c0_i32_0 = arith.constant 0 : i32
    %c0_i32_1 = arith.constant 0 : i32
    return %c0_i32, %c0_i32_0 : i32, i32
  }
  func.func @transform_2(%arg0: i32, %arg1: i32) -> (i32, i32) {
    %c0_i32 = arith.constant 0 : i32
    %c0_i32_0 = arith.constant 0 : i32
    %c0_i32_1 = arith.constant 0 : i32
    return %c0_i32, %c0_i32_0 : i32, i32
  }
  func.func @transform_3(%arg0: i32, %arg1: i32) -> (i32, i32, i32) {
    %c0_i32 = arith.constant 0 : i32
    %c0_i32_0 = arith.constant 0 : i32
    return %arg0, %c0_i32, %arg1 : i32, i32, i32
  }
}

</mosaic_0001>

<llo_original>
// kernel: tpu_custom_call.1
$region0: #{tpu_custom_call.1}
  #allocation0 [shape = 'u32[]', space=smem, size = 0x4, offset = 0x4, fixed_abs, tag = 'smem constant byte address 0x4 - core index']
  #allocation1 [shape = 'u32[144,128]{1,0:T(1,128)}', space=vmem, size = 0x12000, scoped, tag = 'internal scratch']
  %s0 = inlined_call_operand.vmem [shape: f32[2,147,128], index: 0, kind: input, shape index: {}]
  %s1 = inlined_call_operand.vmem [shape: f32[32,147], index: 1, kind: input, shape index: {}]
  %s2 = inlined_call_operand.vmem [shape: f32[32,1], index: 2, kind: input, shape index: {}]
  %s3 = inlined_call_operand.hbm [shape: f32[2,32,128], index: 3, kind: output, shape index: {}]
  %s4 = sld [smem:[#allocation0]]
  $region45: #{tpu_custom_call.1} parent=0
    _
  %s6 = ssub.s32 1, %s4
  %s7 = scalar_select 0, %s6, %s4
  $region1: #{tpu_custom_call.1} parent=0
    #allocation2 [shape = 'u8[32768]{0}', space=vmem, size = 0x8000, scoped, tag = 'output window, operand 0']
    #allocation3 [shape = 's32[2]{0}', space=sflag, size = 0x8, scoped, tag = 'scoped memory for tpu_custom_call.1']
    %8 = vsyncpa [#allocation3], 0
    %s9 = scalar_lea.sflag [#allocation3], 1
    %10 = vsyncpa %s9, 0
    loop: start=0, step=1, limit=4
    $region2: #{tpu_custom_call.1} parent=1 // loop_pre_header
      _
    $region3: #{tpu_custom_call.1} parent=1 // loop_header
      %s12 = sphi 0, %s16
      %p13 = scmp.ge.s32.totalorder %s12, 4
      %s19 = sphi 0, %s31
      %s20 = sphi 0, %s27
      %s21 = sphi 0, %s19
      %s22 = sphi 0, %s20
      %s23 = sphi 0, %s21
      %s24 = sphi 0, %s22
      %s36 = sphi 0, %s38
      %s39 = sphi 0, %s36
      %s40 = sphi 0, %s39
      %s56 = sphi 0, %s40
      %s60 = sphi 0, %s60
      %s62 = sphi 0, %s60
      %s63 = sphi 0, %s62
      %s77 = sphi 0, %s63
      %s81 = sphi 0, %s81
      %s83 = sphi 0, %s81
      %s84 = sphi 0, %s83
      %s98 = sphi 0, %s84
      %s106 = sphi 0, %s108
      %s109 = sphi 0, %s106
      %s110 = sphi 0, %s109
      %s126 = sphi 0, %s110
    $region4: #{tpu_custom_call.1} parent=1 // loop_header_branch
      %15 = sbr.rel (%p13) target = $region8
    $region5: #{tpu_custom_call.1} parent=1 // loop_body
      %s17 = ssub.s32 %s12, 1
      %s18 = ssub.s32 %s12, 2
      %s25 = sadd.s32 1, %s20
      %p26 = scmp.ge.s32.totalorder %s25, 1
      %s27 = scalar_select %p26, 0, %s25
      %s28 = sadd.s32 1, %s19
      %s29 = scalar_select %p26, %s28, %s19
      %p30 = scmp.ge.s32.totalorder %s29, 2
      %s31 = scalar_select %p30, 0, %s29
      %s32 = ssub.s32 %s19, %s31
      %s33 = ssub.s32 %s20, %s27
      %s34 = sor.u32 %s32, %s33
      %p35 = scmp.eq.s32.totalorder %s34, 0
      %s37 = sadd.s32 %s36, 1
      %s38 = scalar_select %p35, %s36, %s37
      %p41 = pneg %p35
      %p42 = scmp.eq.s32.totalorder %s12, 1
      %p43 = por %p41, %p42
      %p44 = scmp.ne.s32.totalorder %s36, %s39
      %p45 = scmp.eq.s32.totalorder %s12, 0
      %p46 = por %p44, %p45
      %p47 = scmp.ne.s32.totalorder %s36, %s39
      %p48 = scmp.eq.s32.totalorder %s17, 1
      %p49 = por %p47, %p48
      %p50 = scmp.ne.s32.totalorder %s39, %s40
      %p51 = scmp.eq.s32.totalorder %s17, 0
      %p52 = por %p50, %p51
      %p53 = scmp.ne.s32.totalorder %s39, %s40
      %p54 = scmp.eq.s32.totalorder %s18, 1
      %p55 = por %p53, %p54
      %p57 = scmp.ne.s32.totalorder %s40, %s56
      %p58 = scmp.eq.s32.totalorder %s18, 0
      %p59 = por %p57, %p58
      %s61 = sadd.s32 %s60, 1
      %p64 = scmp.eq.s32.totalorder %s12, 1
      %p65 = scmp.ne.s32.totalorder %s60, %s62
      %p66 = scmp.eq.s32.totalorder %s12, 0
      %p67 = por %p65, %p66
      %p68 = scmp.ne.s32.totalorder %s60, %s62
      %p69 = scmp.eq.s32.totalorder %s17, 1
      %p70 = por %p68, %p69
      %p71 = scmp.ne.s32.totalorder %s62, %s63
      %p72 = scmp.eq.s32.totalorder %s17, 0
      %p73 = por %p71, %p72
      %p74 = scmp.ne.s32.totalorder %s62, %s63
      %p75 = scmp.eq.s32.totalorder %s18, 1
      %p76 = por %p74, %p75
      %p78 = scmp.ne.s32.totalorder %s63, %s77
      %p79 = scmp.eq.s32.totalorder %s18, 0
      %p80 = por %p78, %p79
      %s82 = sadd.s32 %s81, 1
      %p85 = scmp.eq.s32.totalorder %s12, 1
      %p86 = scmp.ne.s32.totalorder %s81, %s83
      %p87 = scmp.eq.s32.totalorder %s12, 0
      %p88 = por %p86, %p87
      %p89 = scmp.ne.s32.totalorder %s81, %s83
      %p90 = scmp.eq.s32.totalorder %s17, 1
      %p91 = por %p89, %p90
      %p92 = scmp.ne.s32.totalorder %s83, %s84
      %p93 = scmp.eq.s32.totalorder %s17, 0
      %p94 = por %p92, %p93
      %p95 = scmp.ne.s32.totalorder %s83, %s84
      %p96 = scmp.eq.s32.totalorder %s18, 1
      %p97 = por %p95, %p96
      %p99 = scmp.ne.s32.totalorder %s84, %s98
      %p100 = scmp.eq.s32.totalorder %s18, 0
      %p101 = por %p99, %p100
      %s102 = ssub.s32 %s19, %s31
      %s103 = ssub.s32 %s20, %s27
      %s104 = sor.u32 %s102, %s103
      %p105 = scmp.eq.s32.totalorder %s104, 0
      %s107 = sadd.s32 %s106, 1
      %s108 = scalar_select %p105, %s106, %s107
      %p111 = pneg %p105
      %p112 = scmp.eq.s32.totalorder %s12, 1
      %p113 = por %p111, %p112
      %p114 = scmp.ne.s32.totalorder %s106, %s109
      %p115 = scmp.eq.s32.totalorder %s12, 0
      %p116 = por %p114, %p115
      %p117 = scmp.ne.s32.totalorder %s106, %s109
      %p118 = scmp.eq.s32.totalorder %s17, 1
      %p119 = por %p117, %p118
      %p120 = scmp.ne.s32.totalorder %s109, %s110
      %p121 = scmp.eq.s32.totalorder %s17, 0
      %p122 = por %p120, %p121
      %p123 = scmp.ne.s32.totalorder %s109, %s110
      %p124 = scmp.eq.s32.totalorder %s18, 1
      %p125 = por %p123, %p124
      %p127 = scmp.ne.s32.totalorder %s110, %s126
      %p128 = scmp.eq.s32.totalorder %s18, 0
      %p129 = por %p127, %p128
      %p130 = scmp.le.s32.totalorder 1, %s12
      %p131 = scmp.lt.s32.totalorder %s12, 3
      %p132 = pnand %p130, %p131
      %p133 = pneg %p132
      // Predicated region
      $region9: #{tpu_custom_call.1} parent=5 // pred_check
        _
      $region10: #{tpu_custom_call.1} parent=5 // pred_check_branch
        %135 = sbr.rel (%p132) target = $region12
      $region11: #{tpu_custom_call.1} parent=5 // pred_region
        %s136 = ssub.s32 %s12, 1
        // Predicated region
        $region13: #{tpu_custom_call.1} parent=11 // pred_check
          %p137 = pneg %p73
        $region14: #{tpu_custom_call.1} parent=11 // pred_check_branch
          %139 = sbr.rel (%p137) target = $region16
        $region15: #{tpu_custom_call.1} parent=11 // pred_region
          _
        $region16: #{tpu_custom_call.1} parent=11 // pred_fallthru
          _
        // Predicated region
        $region17: #{tpu_custom_call.1} parent=11 // pred_check
          %p140 = pneg %p94
        $region18: #{tpu_custom_call.1} parent=11 // pred_check_branch
          %142 = sbr.rel (%p140) target = $region20
        $region19: #{tpu_custom_call.1} parent=11 // pred_region
          _
        $region20: #{tpu_custom_call.1} parent=11 // pred_fallthru
          _
      $region12: #{tpu_custom_call.1} parent=5 // pred_fallthru
        _
      %p143 = scmp.lt.s32.totalorder %s12, 2
      // Predicated region
      $region21: #{tpu_custom_call.1} parent=5 // pred_check
        %p144 = pneg %p143
      $region22: #{tpu_custom_call.1} parent=5 // pred_check_branch
        %146 = sbr.rel (%p144) target = $region24
      $region23: #{tpu_custom_call.1} parent=5 // pred_region
        // Predicated region
        $region25: #{tpu_custom_call.1} parent=23 // pred_check
          %p147 = pneg %p46
        $region26: #{tpu_custom_call.1} parent=23 // pred_check_branch
          %149 = sbr.rel (%p147) target = $region28
        $region27: #{tpu_custom_call.1} parent=23 // pred_region
          %p150 = scmp.lt.s32.totalorder %s19, 1
          %s151 = scalar_select %p150, %s19, 1
          %p152 = scmp.lt.s32.totalorder %s20, 0
          %s153 = scalar_select %p152, %s20, 0
          %s154 = smul.addr %s151, 19
          %s155 = sadd.s32 %s153, %s154
          %s156 = smul.addr %s155, 8
          %s157 = scalar_lea.vmem %s0, %s156
        $region28: #{tpu_custom_call.1} parent=23 // pred_fallthru
          _
      $region24: #{tpu_custom_call.1} parent=5 // pred_fallthru
        _
      %p158 = scmp.le.s32.totalorder 1, %s12
      %p159 = scmp.lt.s32.totalorder %s12, 3
      %p160 = pnand %p158, %p159
      %p161 = pneg %p160
      // Predicated region
      $region29: #{tpu_custom_call.1} parent=5 // pred_check
        _
      $region30: #{tpu_custom_call.1} parent=5 // pred_check_branch
        %163 = sbr.rel (%p160) target = $region32
      $region31: #{tpu_custom_call.1} parent=5 // pred_region
        %s164 = ssub.s32 %s12, 1
        %p165 = scmp.lt.s32.totalorder %s21, 1
        %s166 = scalar_select %p165, %s21, 1
        %p167 = scmp.lt.s32.totalorder %s22, 0
        %s168 = scalar_select %p167, %s22, 0
        %s169 = smul.addr %s166, 19
        %s170 = sadd.s32 %s168, %s169
        %s171 = smul.addr %s170, 8
        %s172 = scalar_lea.vmem %s0, %s171
        %p173 = pneg %p52
        %p174 = pneg %p49
        %p175 = pneg %p73
        %p176 = pneg %p70
        %p177 = pneg %p94
        %p178 = pneg %p91
        %p179 = pneg %p122
        %p180 = pneg %p119
        %s181 = sand.u32 %s109, 1
        %s182 = scalar_lea.sflag [#allocation3], %s181
        %s183 = sand.u32 %s109, 1
        %s184 = smul.addr %s183, 32
        %s185 = scalar_lea.vmem [#allocation2], %s184
        %p186 = scmp.lt.s32.totalorder %s21, 1
        %s187 = scalar_select %p186, %s21, 1
        %p188 = scmp.lt.s32.totalorder %s22, 0
        %s189 = scalar_select %p188, %s22, 0
        %s190 = smul.addr %s187, 19
        %s191 = sadd.s32 %s189, %s190
        %s192 = smul.addr %s191, 8
        %s193 = scalar_lea.vmem %s0, %s192
        %v194 = vld [vmem:[%s1] sm:$0xff]
        %v195 = vld [vmem:[%s1 + $0x8] sm:$0xff]
        %v196 = vld [vmem:[%s1 + $0x10] sm:$0xff]
        %v197 = vld [vmem:[%s1 + $0x18] sm:$0xff]
        %v198 = vld [vmem:[%s1 + $0x20] sm:$0xff]
        %v199 = vld [vmem:[%s1 + $0x28] sm:$0xff]
        %v200 = vld [vmem:[%s1 + $0x30] sm:$0xff]
        %v201 = vld [vmem:[%s1 + $0x38] sm:$0xff]
        %v202 = vld [vmem:[%s193] sm:$0xff]
        %v203 = vld [vmem:[%s193 + $0x8] sm:$0xff]
        %v204 = vld [vmem:[%s193 + $0x10] sm:$0xff]
        %v205 = vld [vmem:[%s193 + $0x18] sm:$0xff]
        %v206 = vld [vmem:[%s193 + $0x20] sm:$0xff]
        %v207 = vld [vmem:[%s193 + $0x28] sm:$0xff]
        %v208 = vld [vmem:[%s193 + $0x30] sm:$0xff]
        %v209 = vld [vmem:[%s193 + $0x38] sm:$0xff]
        %v210 = vld [vmem:[%s193 + $0x40] sm:$0xff]
        %v211 = vld [vmem:[%s193 + $0x48] sm:$0xff]
        %v212 = vld [vmem:[%s193 + $0x50] sm:$0xff]
        %v213 = vld [vmem:[%s193 + $0x58] sm:$0xff]
        %v214 = vld [vmem:[%s193 + $0x60] sm:$0xff]
        %v215 = vld [vmem:[%s193 + $0x68] sm:$0xff]
        %v216 = vld [vmem:[%s193 + $0x70] sm:$0xff]
        %v217 = vld [vmem:[%s193 + $0x78] sm:$0xff]
        %v218 = vld [vmem:[%s193 + $0x80] sm:$0xff]
        %v219 = vld [vmem:[%s193 + $0x88] sm:$0xff]
        %v220 = vld [vmem:[%s193 + $0x90] sm:$0x7]
        %v221 = vld [vmem:[%s2] sm:$0xff]
        %v222 = vld [vmem:[%s2 + $0x8] sm:$0xff]
        %v223 = vld [vmem:[%s2 + $0x10] sm:$0xff]
        %v224 = vld [vmem:[%s2 + $0x18] sm:$0xff]
        %226 = vset.pattern.permute.xlu0 0
        %227 = vperm.xlu0 %226, %v221
        %v228 = vpop.permute.xlu0 %227
        %231 = vset.pattern.permute.xlu0 0
        %232 = vperm.xlu0 %231, %v222
        %v233 = vpop.permute.xlu0 %232
        %236 = vset.pattern.permute.xlu0 0
        %237 = vperm.xlu0 %236, %v223
        %v238 = vpop.permute.xlu0 %237
        %241 = vset.pattern.permute.xlu0 0
        %242 = vperm.xlu0 %241, %v224
        %v243 = vpop.permute.xlu0 %242
        %vm245 = vcmask 154624
        %v247 = vsel %vm245, %v195, 0
        %v250 = vsel %vm245, %v197, 0
        %v253 = vsel %vm245, %v199, 0
        %v256 = vsel %vm245, %v201, 0
        %vm258 = vcmask 1042432
        %v260 = vsel %vm258, %v220, 0
        %262 = vmatprep.subr.mxu0 0.0
        %263 = vmatpush1.msra.mxu0 %v202
        %264 = vmatprep.subr.mxu0 0.0
        %265 = vmatpush1.msra.mxu0 %v203
        %266 = vmatprep.subr.mxu0 0.0
        %267 = vmatpush1.msra.mxu0 %v204
        %268 = vmatprep.subr.mxu0 0.0
        %269 = vmatpush1.msra.mxu0 %v205
        %270 = vmatprep.subr.mxu0 0.0
        %271 = vmatpush1.msra.mxu0 %v206
        %272 = vmatprep.subr.mxu0 0.0
        %273 = vmatpush1.msra.mxu0 %v207
        %274 = vmatprep.subr.mxu0 0.0
        %275 = vmatpush1.msra.mxu0 %v208
        %276 = vmatprep.subr.mxu0 0.0
        %277 = vmatpush1.msra.mxu0 %v209
        %278 = vmatprep.subr.mxu0 0.0
        %279 = vmatpush1.msra.mxu0 %v210
        %280 = vmatprep.subr.mxu0 0.0
        %281 = vmatpush1.msra.mxu0 %v211
        %282 = vmatprep.subr.mxu0 0.0
        %283 = vmatpush1.msra.mxu0 %v212
        %284 = vmatprep.subr.mxu0 0.0
        %285 = vmatpush1.msra.mxu0 %v213
        %286 = vmatprep.subr.mxu0 0.0
        %287 = vmatpush1.msra.mxu0 %v214
        %288 = vmatprep.subr.mxu0 0.0
        %289 = vmatpush1.msra.mxu0 %v215
        %290 = vmatprep.subr.mxu0 0.0
        %291 = vmatpush1.msra.mxu0 %v216
        %292 = vmatprep.subr.mxu0 0.0
        %293 = vmatpush1.msra.mxu0 %v217
        %294 = vmatprep.subr.mxu0 0.0
        %295 = vmatpush1.msra.mxu0 %v218
        %296 = vmatprep.subr.mxu0 0.0
        %297 = vmatpush1.msra.mxu0 %v219
        %298 = vmatprep.subr.mxu0 0.0
        %299 = vmatpush1.msra.mxu0 %v260
        %300 = vmatprep.subr.mxu0 0.0
        %301 = vmatpush1.msra.mxu0 0.0
        %302 = vmatprep.subr.mxu0 0.0
        %303 = vmatpush1.msra.mxu0 0.0
        %304 = vmatprep.subr.mxu0 0.0
        %305 = vmatpush1.msra.mxu0 0.0
        %306 = vmatprep.subr.mxu0 0.0
        %307 = vmatpush1.msra.mxu0 0.0
        %308 = vmatprep.subr.mxu0 0.0
        %309 = vmatpush1.msra.mxu0 0.0
        %310 = vmatprep.subr.mxu0 0.0
        %311 = vmatpush1.msra.mxu0 0.0
        %312 = vmatprep.subr.mxu0 0.0
        %313 = vmatpush1.msra.mxu0 0.0
        %314 = vmatprep.subr.mxu0 0.0
        %315 = vmatpush1.msra.mxu0 0.0
        %316 = vmatprep.subr.mxu0 0.0
        %317 = vmatpush1.msra.mxu0 0.0
        %318 = vmatprep.subr.mxu0 0.0
        %319 = vmatpush1.msra.mxu0 0.0
        %320 = vmatprep.subr.mxu0 0.0
        %321 = vmatpush1.msra.mxu0 0.0
        %322 = vmatprep.subr.mxu0 0.0
        %323 = vmatpush1.msra.mxu0 0.0
        %324 = vmatprep.subr.mxu0 0.0
        %325 = vmatpush1.msra.mxu0 0.0
        %326 = vmatprep.mubr.f32.mxu0 %v247
        %327 = vmatmul.mubr.f32.gmra.mrb[0].mxu0 %v194
        %v328 = vpop.f32.mrb[0].mxu0
        %v329 = vadd.f32 %v228, %v328
        %v330 = vpop.f32.mrb[0].mxu0
        %331 = vmatprep.mubr.f32.mxu0 %v250
        %332 = vmatmul.mubr.f32.gmra.mrb[0].mxu0 %v196
        %v333 = vpop.f32.mrb[0].mxu0
        %v334 = vadd.f32 %v233, %v333
        %v335 = vpop.f32.mrb[0].mxu0
        %336 = vmatprep.mubr.f32.mxu0 %v253
        %337 = vmatmul.mubr.f32.gmra.mrb[0].mxu0 %v198
        %v338 = vpop.f32.mrb[0].mxu0
        %v339 = vadd.f32 %v238, %v338
        %v340 = vpop.f32.mrb[0].mxu0
        %341 = vmatprep.mubr.f32.mxu0 %v256
        %342 = vmatmul.mubr.f32.gmra.mrb[0].mxu0 %v200
        %v343 = vpop.f32.mrb[0].mxu0
        %v344 = vadd.f32 %v243, %v343
        %v345 = vpop.f32.mrb[0].mxu0
        %346 = vdwg.mxu0
        %347 = vst [vmem:[%s185] sm:$0xff] %v329
        %348 = vst [vmem:[%s185 + $0x8] sm:$0xff] %v334
        %349 = vst [vmem:[%s185 + $0x10] sm:$0xff] %v339
        %350 = vst [vmem:[%s185 + $0x18] sm:$0xff] %v344
        %s351 = sand.u32 %s109, 1
        %s352 = scalar_lea.sflag [#allocation3], %s351
        %s353 = sand.u32 %s109, 1
        %s354 = smul.addr %s353, 32
        %s355 = scalar_lea.vmem [#allocation2], %s354
        // Predicated region
        $region33: #{tpu_custom_call.1} parent=31 // pred_check
          %p356 = pneg %p119
        $region34: #{tpu_custom_call.1} parent=31 // pred_check_branch
          %358 = sbr.rel (%p356) target = $region36
        $region35: #{tpu_custom_call.1} parent=31 // pred_region
          %s360 = ssub.s32 512, 512
          %361 = vsyncadd %s352, %s360
          %s362 = smul.addr %s21, 4
          %s363 = sadd.s32 %s22, %s362
          %s364 = smul.addr %s363, 128
          %s365 = scalar_lea.hbm %s3, %s364
          %s366 = sshll.u32 %s355, 4
          %s367 = int_to_ptr.vmem [resolvable:$true] %s366
          %372 = dma.vmem_to_hbm [thread:$0]  %s367, 512, %s365, %s352, 128, 128, 8
        $region36: #{tpu_custom_call.1} parent=31 // pred_fallthru
          _
      $region32: #{tpu_custom_call.1} parent=5 // pred_fallthru
        _
      %p373 = scmp.le.s32.totalorder 2, %s12
      // Predicated region
      $region37: #{tpu_custom_call.1} parent=5 // pred_check
        %p374 = pneg %p373
      $region38: #{tpu_custom_call.1} parent=5 // pred_check_branch
        %376 = sbr.rel (%p374) target = $region40
      $region39: #{tpu_custom_call.1} parent=5 // pred_region
        %s377 = ssub.s32 %s12, 2
        // Predicated region
        $region41: #{tpu_custom_call.1} parent=39 // pred_check
          %p378 = pneg %p125
        $region42: #{tpu_custom_call.1} parent=39 // pred_check_branch
          %380 = sbr.rel (%p378) target = $region44
        $region43: #{tpu_custom_call.1} parent=39 // pred_region
          %s381 = sand.u32 %s110, 1
          %s382 = scalar_lea.sflag [#allocation3], %s381
          %s383 = sand.u32 %s110, 1
          %s384 = smul.addr %s383, 32
          %s385 = scalar_lea.vmem [#allocation2], %s384
          %386 = dma.done %s382, 512
        $region44: #{tpu_custom_call.1} parent=39 // pred_fallthru
          _
      $region40: #{tpu_custom_call.1} parent=5 // pred_fallthru
        _
    $region6: #{tpu_custom_call.1} parent=1 // loop_footer
      %s16 = sadd.s32 1, %s12
    $region7: #{tpu_custom_call.1} parent=1 // loop_footer_branch
      %11 = sbr.rel target = $region3
    $region8: #{tpu_custom_call.1} parent=1 // loop_exit
      _
    %387 = vsyncpa [#allocation3], 1
    %s388 = scalar_lea.sflag [#allocation3], 1
    %389 = vsyncpa %s388, 1

</llo_original>
